<compile_context>
chip_gen: v7x
topology: tpu7x:2x2x1
jax: 0.10.0
libtpu: 0.0.40
codegen_flags: <defaults>
</compile_context>

<pallas_src>
import jax
import jax.numpy as jnp
from jax import lax
from jax.experimental import pallas as pl
from jax.experimental.pallas import tpu as pltpu


def _pc_conv_bp_kernel(w_ref, p_ref, out_ref):
    # w_ref  : (2*Cp, K)      stacked [3x3 conv ; 1x1 bypass@center-tap] weights
    # p_ref  : (1, K, Tn)     im2col patch tile for one image (lane-dense N)
    # out_ref: (1, Cp, Tn)    lane-dense output tile
    cp = out_ref.shape[1]

    # Single MXU matmul, f32 accumulation: (2*Cp, K) @ (K, Tn) -> (2*Cp, Tn)
    res = jnp.dot(w_ref[...], p_ref[0],
                  preferred_element_type=jnp.float32)

    ff = res[:cp, :]     # 3x3 conv branch   (rows 0:Cp, sublane-tile aligned)
    bp = res[cp:, :]     # 1x1 bypass branch (rows Cp:2*Cp)

    out_ref[0, :, :] = (jnp.maximum(ff, 0.0) + bp).astype(out_ref.dtype)


def _choose_tile_n(hw, target):
    """Largest lane-dense tile (multiple of 128, divides hw) not above target."""
    if hw % 128 != 0:
        return hw                      # full extent: allowed (equals array dim)
    t = min(max(target, 128), hw)
    t -= t % 128
    while hw % t != 0:
        t -= 128
    return t


def pc_conv_bp(x_nchw, w_ff_oihw, w_bp_oihw, *,
               compute_dtype=None, tile_n_target=2048):
    """Forward pass of PcConvBp.

    x_nchw   : (B, Cin, H, W)       input (PyTorch NCHW layout)
    w_ff_oihw: (Cout, Cin, 3, 3)    FFconv weight (PyTorch OIHW layout)
    w_bp_oihw: (Cout, Cin, 1, 1)    bypass weight (PyTorch OIHW layout)
    returns  : (B, Cout, H, W)
    """
    B, Cin, H, W = x_nchw.shape
    Cout = w_ff_oihw.shape[0]
    K = 9 * Cin
    HW = H * W
    out_dtype = x_nchw.dtype
    if compute_dtype is None:
        compute_dtype = x_nchw.dtype

    # Keep the ff/bp row split on f32 sublane-tile (8-row) boundaries.
    cout_p = ((Cout + 7) // 8) * 8

    # ---- im2col with B kept leading (no HBM transposes; XLA, one pass) ------
    # rows r = tap*Cin + cin with tap = kh*3 + kw ; cols = h*W + w
    xpad = jnp.pad(x_nchw, ((0, 0), (0, 0), (1, 1), (1, 1)))      # (B,Cin,H+2,W+2)
    taps = [xpad[:, :, kh:kh + H, kw:kw + W]
            for kh in range(3) for kw in range(3)]                # 9 x (B,Cin,H,W)
    patches = (jnp.stack(taps, axis=1)                            # (B,9,Cin,H,W)
               .reshape(B, K, HW)                                 # (B,K,HW)
               .astype(compute_dtype))

    # ---- stacked weight (2*Cp, K): [ff ; pad ; bp@center-tap ; pad] ----------
    wff_t = jnp.transpose(w_ff_oihw, (0, 2, 3, 1)).reshape(Cout, K)
    wbp_2d = w_bp_oihw[:, :, 0, 0]                                # (Cout, Cin)
    center = 4 * Cin                                              # tap kh=kw=1
    w_t = jnp.zeros((2 * cout_p, K), compute_dtype)
    w_t = w_t.at[:Cout, :].set(wff_t.astype(compute_dtype))
    w_t = w_t.at[cout_p:cout_p + Cout, center:center + Cin].set(
        wbp_2d.astype(compute_dtype))

    # ---- tiling & VMEM budget ------------------------------------------------
    tile_n = _choose_tile_n(HW, tile_n_target)
    n_tiles = HW // tile_n

    itemsize = jnp.dtype(compute_dtype).itemsize
    vmem_need = (2 * (K + cout_p) * tile_n * itemsize   # double-buffered P/out tiles
                 + 2 * cout_p * K * itemsize            # resident stacked weights
                 + 2 * cout_p * tile_n * 4)             # f32 accumulator headroom
    vmem_limit = int(min(max(4 * vmem_need, 16 << 20), 48 << 20))  # < v7x 64 MiB

    out = pl.pallas_call(
        _pc_conv_bp_kernel,
        out_shape=jax.ShapeDtypeStruct((B, cout_p, HW), out_dtype),
        grid_spec=pltpu.PrefetchScalarGridSpec(
            num_scalar_prefetch=0,
            grid=(B, n_tiles),
            in_specs=[
                # weights: constant index_map -> stays VMEM-resident across steps
                pl.BlockSpec((2 * cout_p, K), lambda b, j: (0, 0)),
                # streamed im2col tile (lane-dense last dim)
                pl.BlockSpec((1, K, tile_n), lambda b, j: (b, 0, j)),
            ],
            out_specs=pl.BlockSpec((1, cout_p, tile_n), lambda b, j: (b, 0, j)),
        ),
        compiler_params=pltpu.CompilerParams(
            dimension_semantics=("parallel", "parallel"),
            vmem_limit_bytes=vmem_limit),
    )(w_t, patches)                                               # (B, Cp, HW)

    if cout_p != Cout:
        out = out[:, :Cout, :]
    return out.reshape(B, Cout, H, W)


def _reference(x_nchw, w_ff_oihw, w_bp_oihw):
    """Plain-JAX reference matching the PyTorch forward exactly."""
    dn = ("NCHW", "OIHW", "NCHW")
    y = lax.conv_general_dilated(
        x_nchw, w_ff_oihw, window_strides=(1, 1),
        padding=((1, 1), (1, 1)), dimension_numbers=dn)
    y = jnp.maximum(y, 0.0)
    bp = lax.conv_general_dilated(
        x_nchw, w_bp_oihw, window_strides=(1, 1),
        padding="VALID", dimension_numbers=dn)
    return y + bp


if __name__ == "__main__":
    # Small shapes consistent with the module: inchan=4, outchan=8, 16x16 images.
    B, Cin, Cout, H, W = 2, 4, 8, 16, 16

    key = jax.random.PRNGKey(0)
    kx, kff, kbp = jax.random.split(key, 3)

    x = jax.random.normal(kx, (B, Cin, H, W), dtype=jnp.float32)
    # Deterministic weight init (kaiming-uniform-like scale); bias=False in the module.
    fan_ff = Cin * 3 * 3
    fan_bp = Cin * 1 * 1
    w_ff = jax.random.uniform(kff, (Cout, Cin, 3, 3), jnp.float32,
                              -1.0, 1.0) / (fan_ff ** 0.5)
    w_bp = jax.random.uniform(kbp, (Cout, Cin, 1, 1), jnp.float32,
                              -1.0, 1.0) / (fan_bp ** 0.5)

    ref = jax.block_until_ready(_reference(x, w_ff, w_bp))

    # f32 path: tight tolerance.
    out = jax.block_until_ready(pc_conv_bp(x, w_ff, w_bp))
    assert out.shape == (B, Cout, H, W)
    assert jnp.allclose(out, ref, atol=1e-4, rtol=1e-4), (
        f"f32 max abs err {jnp.max(jnp.abs(out - ref))}")

    # bf16-operand path (production config: halves HBM bytes of the P stream,
    # native MXU rate); accumulation stays f32, so tolerance is only loosened
    # by input rounding.
    out_bf16 = jax.block_until_ready(
        pc_conv_bp(x, w_ff, w_bp, compute_dtype=jnp.bfloat16))
    assert out_bf16.shape == (B, Cout, H, W)
    assert float(jnp.max(jnp.abs(out_bf16 - ref))) < 1e-1, (
        f"bf16 max abs err {jnp.max(jnp.abs(out_bf16 - ref))}")

    print("KERNEL_OK")
</pallas_src>

<mosaic_0001>
module attributes {stable_mosaic.version = 11 : i64} {
  func.func @_pc_conv_bp_kernel(%arg0: i32, %arg1: i32, %arg2: memref<16x36xf32, #tpu.memory_space<vmem>>, %arg3: memref<1x36x256xf32, #tpu.memory_space<vmem>>, %arg4: memref<1x8x256xf32, #tpu.memory_space<vmem>>) attributes {dimension_semantics = [#tpu.dimension_semantics<parallel>, #tpu.dimension_semantics<parallel>], iteration_bounds = array<i64: 2, 1>, scalar_prefetch = 0 : i64, scratch_operands = 0 : i64, tpu.core_type = #tpu.core_type<tc>, window_params = [{pipeline_mode = #tpu.pipeline_mode<synchronous>, transform_indices = @transform_0, window_bounds = array<i64: 16, 36>}, {transform_indices = @transform_1, window_bounds = array<i64: 1, 36, 256>}, {transform_indices = @transform_2, window_bounds = array<i64: 1, 8, 256>}]} {
    %c0 = arith.constant 0 : index
    %c0_0 = arith.constant 0 : index
    %0 = vector.load %arg2[%c0, %c0_0] : memref<16x36xf32, #tpu.memory_space<vmem>>, vector<16x36xf32>
    %c0_1 = arith.constant 0 : index
    %c0_2 = arith.constant 0 : index
    %c0_3 = arith.constant 0 : index
    %1 = vector.load %arg3[%c0_1, %c0_2, %c0_3] : memref<1x36x256xf32, #tpu.memory_space<vmem>>, vector<1x36x256xf32>
    %2 = vector.shape_cast %1 : vector<1x36x256xf32> to vector<36x256xf32>
    %cst = arith.constant dense<0.000000e+00> : vector<16x256xf32>
    %3 = tpu.matmul %0, %2, %cst {dimension_numbers = #tpu.dot_dimension_numbers<[1], [0], [0], [1], [0, 0, 1, 1], [], []>} : vector<16x36xf32>, vector<36x256xf32>, vector<16x256xf32> -> vector<16x256xf32>
    %4 = vector.extract_strided_slice %3 {offsets = [0, 0], sizes = [8, 256], strides = [1, 1]} : vector<16x256xf32> to vector<8x256xf32>
    %5 = vector.extract_strided_slice %3 {offsets = [8, 0], sizes = [8, 256], strides = [1, 1]} : vector<16x256xf32> to vector<8x256xf32>
    %cst_4 = arith.constant 0.000000e+00 : f32
    %6 = vector.broadcast %cst_4 : f32 to vector<8x256xf32>
    %7 = arith.maximumf %4, %6 : vector<8x256xf32>
    %8 = arith.addf %7, %5 : vector<8x256xf32>
    %c0_5 = arith.constant 0 : index
    %c0_6 = arith.constant 0 : index
    %c0_7 = arith.constant 0 : index
    %9 = vector.load %arg4[%c0_5, %c0_6, %c0_7] : memref<1x8x256xf32, #tpu.memory_space<vmem>>, vector<1x8x256xf32>
    %10 = vector.shape_cast %9 : vector<1x8x256xf32> to vector<8x256xf32>
    %11 = vector.shape_cast %8 : vector<8x256xf32> to vector<1x8x256xf32>
    tpu.vector_store %arg4[%c0_5, %c0_6, %c0_7], %11 {strides = array<i32>} : memref<1x8x256xf32, #tpu.memory_space<vmem>>, vector<1x8x256xf32>,
    return
  }
  func.func @transform_0(%arg0: i32, %arg1: i32) -> (i32, i32) {
    %c0_i32 = arith.constant 0 : i32
    %c0_i32_0 = arith.constant 0 : i32
    %c0_i32_1 = arith.constant 0 : i32
    return %c0_i32, %c0_i32_0 : i32, i32
  }
  func.func @transform_1(%arg0: i32, %arg1: i32) -> (i32, i32, i32) {
    %c0_i32 = arith.constant 0 : i32
    %c0_i32_0 = arith.constant 0 : i32
    return %arg0, %c0_i32, %arg1 : i32, i32, i32
  }
  func.func @transform_2(%arg0: i32, %arg1: i32) -> (i32, i32, i32) {
    %c0_i32 = arith.constant 0 : i32
    %c0_i32_0 = arith.constant 0 : i32
    return %arg0, %c0_i32, %arg1 : i32, i32, i32
  }
}

</mosaic_0001>

<llo_original>
// kernel: tpu_custom_call.1
$region0: #{tpu_custom_call.1}
  #allocation0 [shape = 'u32[]', space=smem, size = 0x4, offset = 0x4, fixed_abs, tag = 'smem constant byte address 0x4 - core index']
  #allocation1 [shape = 'u32[144,128]{1,0:T(1,128)}', space=vmem, size = 0x12000, scoped, tag = 'internal scratch']
  %s0 = inlined_call_operand.vmem [shape: f32[16,36], index: 0, kind: input, shape index: {}]
  %s1 = inlined_call_operand.vmem [shape: f32[2,36,256], index: 1, kind: input, shape index: {}]
  %s2 = inlined_call_operand.hbm [shape: f32[2,8,256], index: 2, kind: output, shape index: {}]
  %s3 = sld [smem:[#allocation0]]
  $region41: #{tpu_custom_call.1} parent=0
    _
  %s5 = ssub.s32 1, %s3
  %s6 = scalar_select 0, %s5, %s3
  $region1: #{tpu_custom_call.1} parent=0
    #allocation2 [shape = 'u8[16384]{0}', space=vmem, size = 0x4000, scoped, tag = 'output window, operand 0']
    #allocation3 [shape = 's32[2]{0}', space=sflag, size = 0x8, scoped, tag = 'scoped memory for tpu_custom_call.1']
    %7 = vsyncpa [#allocation3], 0
    %s8 = scalar_lea.sflag [#allocation3], 1
    %9 = vsyncpa %s8, 0
    loop: start=0, step=1, limit=4
    $region2: #{tpu_custom_call.1} parent=1 // loop_pre_header
      _
    $region3: #{tpu_custom_call.1} parent=1 // loop_header
      %s11 = sphi 0, %s15
      %p12 = scmp.ge.s32.totalorder %s11, 4
      %s18 = sphi 0, %s30
      %s19 = sphi 0, %s26
      %s20 = sphi 0, %s18
      %s21 = sphi 0, %s19
      %s22 = sphi 0, %s20
      %s23 = sphi 0, %s21
      %s31 = sphi 0, %s31
      %s33 = sphi 0, %s31
      %s34 = sphi 0, %s33
      %s48 = sphi 0, %s34
      %s56 = sphi 0, %s58
      %s59 = sphi 0, %s56
      %s60 = sphi 0, %s59
      %s76 = sphi 0, %s60
      %s84 = sphi 0, %s86
      %s87 = sphi 0, %s84
      %s88 = sphi 0, %s87
      %s104 = sphi 0, %s88
    $region4: #{tpu_custom_call.1} parent=1 // loop_header_branch
      %14 = sbr.rel (%p12) target = $region8
    $region5: #{tpu_custom_call.1} parent=1 // loop_body
      %s16 = ssub.s32 %s11, 1
      %s17 = ssub.s32 %s11, 2
      %s24 = sadd.s32 1, %s19
      %p25 = scmp.ge.s32.totalorder %s24, 1
      %s26 = scalar_select %p25, 0, %s24
      %s27 = sadd.s32 1, %s18
      %s28 = scalar_select %p25, %s27, %s18
      %p29 = scmp.ge.s32.totalorder %s28, 2
      %s30 = scalar_select %p29, 0, %s28
      %s32 = sadd.s32 %s31, 1
      %p35 = scmp.eq.s32.totalorder %s11, 1
      %p36 = scmp.ne.s32.totalorder %s31, %s33
      %p37 = scmp.eq.s32.totalorder %s11, 0
      %p38 = por %p36, %p37
      %p39 = scmp.ne.s32.totalorder %s31, %s33
      %p40 = scmp.eq.s32.totalorder %s16, 1
      %p41 = por %p39, %p40
      %p42 = scmp.ne.s32.totalorder %s33, %s34
      %p43 = scmp.eq.s32.totalorder %s16, 0
      %p44 = por %p42, %p43
      %p45 = scmp.ne.s32.totalorder %s33, %s34
      %p46 = scmp.eq.s32.totalorder %s17, 1
      %p47 = por %p45, %p46
      %p49 = scmp.ne.s32.totalorder %s34, %s48
      %p50 = scmp.eq.s32.totalorder %s17, 0
      %p51 = por %p49, %p50
      %s52 = ssub.s32 %s18, %s30
      %s53 = ssub.s32 %s19, %s26
      %s54 = sor.u32 %s52, %s53
      %p55 = scmp.eq.s32.totalorder %s54, 0
      %s57 = sadd.s32 %s56, 1
      %s58 = scalar_select %p55, %s56, %s57
      %p61 = pneg %p55
      %p62 = scmp.eq.s32.totalorder %s11, 1
      %p63 = por %p61, %p62
      %p64 = scmp.ne.s32.totalorder %s56, %s59
      %p65 = scmp.eq.s32.totalorder %s11, 0
      %p66 = por %p64, %p65
      %p67 = scmp.ne.s32.totalorder %s56, %s59
      %p68 = scmp.eq.s32.totalorder %s16, 1
      %p69 = por %p67, %p68
      %p70 = scmp.ne.s32.totalorder %s59, %s60
      %p71 = scmp.eq.s32.totalorder %s16, 0
      %p72 = por %p70, %p71
      %p73 = scmp.ne.s32.totalorder %s59, %s60
      %p74 = scmp.eq.s32.totalorder %s17, 1
      %p75 = por %p73, %p74
      %p77 = scmp.ne.s32.totalorder %s60, %s76
      %p78 = scmp.eq.s32.totalorder %s17, 0
      %p79 = por %p77, %p78
      %s80 = ssub.s32 %s18, %s30
      %s81 = ssub.s32 %s19, %s26
      %s82 = sor.u32 %s80, %s81
      %p83 = scmp.eq.s32.totalorder %s82, 0
      %s85 = sadd.s32 %s84, 1
      %s86 = scalar_select %p83, %s84, %s85
      %p89 = pneg %p83
      %p90 = scmp.eq.s32.totalorder %s11, 1
      %p91 = por %p89, %p90
      %p92 = scmp.ne.s32.totalorder %s84, %s87
      %p93 = scmp.eq.s32.totalorder %s11, 0
      %p94 = por %p92, %p93
      %p95 = scmp.ne.s32.totalorder %s84, %s87
      %p96 = scmp.eq.s32.totalorder %s16, 1
      %p97 = por %p95, %p96
      %p98 = scmp.ne.s32.totalorder %s87, %s88
      %p99 = scmp.eq.s32.totalorder %s16, 0
      %p100 = por %p98, %p99
      %p101 = scmp.ne.s32.totalorder %s87, %s88
      %p102 = scmp.eq.s32.totalorder %s17, 1
      %p103 = por %p101, %p102
      %p105 = scmp.ne.s32.totalorder %s88, %s104
      %p106 = scmp.eq.s32.totalorder %s17, 0
      %p107 = por %p105, %p106
      %p108 = scmp.le.s32.totalorder 1, %s11
      %p109 = scmp.lt.s32.totalorder %s11, 3
      %p110 = pnand %p108, %p109
      %p111 = pneg %p110
      // Predicated region
      $region9: #{tpu_custom_call.1} parent=5 // pred_check
        _
      $region10: #{tpu_custom_call.1} parent=5 // pred_check_branch
        %113 = sbr.rel (%p110) target = $region12
      $region11: #{tpu_custom_call.1} parent=5 // pred_region
        %s114 = ssub.s32 %s11, 1
        // Predicated region
        $region13: #{tpu_custom_call.1} parent=11 // pred_check
          %p115 = pneg %p44
        $region14: #{tpu_custom_call.1} parent=11 // pred_check_branch
          %117 = sbr.rel (%p115) target = $region16
        $region15: #{tpu_custom_call.1} parent=11 // pred_region
          _
        $region16: #{tpu_custom_call.1} parent=11 // pred_fallthru
          _
      $region12: #{tpu_custom_call.1} parent=5 // pred_fallthru
        _
      %p118 = scmp.lt.s32.totalorder %s11, 2
      // Predicated region
      $region17: #{tpu_custom_call.1} parent=5 // pred_check
        %p119 = pneg %p118
      $region18: #{tpu_custom_call.1} parent=5 // pred_check_branch
        %121 = sbr.rel (%p119) target = $region20
      $region19: #{tpu_custom_call.1} parent=5 // pred_region
        // Predicated region
        $region21: #{tpu_custom_call.1} parent=19 // pred_check
          %p122 = pneg %p66
        $region22: #{tpu_custom_call.1} parent=19 // pred_check_branch
          %124 = sbr.rel (%p122) target = $region24
        $region23: #{tpu_custom_call.1} parent=19 // pred_region
          %s125 = smul.u32 2, %s19
          %p126 = scmp.lt.s32.totalorder %s18, 1
          %s127 = scalar_select %p126, %s18, 1
          %p128 = scmp.lt.s32.totalorder %s125, 1
          %s129 = scalar_select %p128, %s125, 1
          %s130 = smul.addr %s127, 10
          %s131 = sadd.s32 %s129, %s130
          %s132 = smul.addr %s131, 8
          %s133 = scalar_lea.vmem %s1, %s132
          %s134 = smul.u32 2, %s19
        $region24: #{tpu_custom_call.1} parent=19 // pred_fallthru
          _
      $region20: #{tpu_custom_call.1} parent=5 // pred_fallthru
        _
      %p135 = scmp.le.s32.totalorder 1, %s11
      %p136 = scmp.lt.s32.totalorder %s11, 3
      %p137 = pnand %p135, %p136
      %p138 = pneg %p137
      // Predicated region
      $region25: #{tpu_custom_call.1} parent=5 // pred_check
        _
      $region26: #{tpu_custom_call.1} parent=5 // pred_check_branch
        %140 = sbr.rel (%p137) target = $region28
      $region27: #{tpu_custom_call.1} parent=5 // pred_region
        %s141 = ssub.s32 %s11, 1
        %p142 = pneg %p44
        %p143 = pneg %p41
        %s144 = smul.u32 2, %s21
        %p145 = scmp.lt.s32.totalorder %s20, 1
        %s146 = scalar_select %p145, %s20, 1
        %p147 = scmp.lt.s32.totalorder %s144, 1
        %s148 = scalar_select %p147, %s144, 1
        %s149 = smul.addr %s146, 10
        %s150 = sadd.s32 %s148, %s149
        %s151 = smul.addr %s150, 8
        %s152 = scalar_lea.vmem %s1, %s151
        %p153 = pneg %p72
        %p154 = pneg %p69
        %p155 = pneg %p100
        %p156 = pneg %p97
        %s157 = sand.u32 %s87, 1
        %s158 = scalar_lea.sflag [#allocation3], %s157
        %s159 = sand.u32 %s87, 1
        %s160 = smul.addr %s159, 16
        %s161 = scalar_lea.vmem [#allocation2], %s160
        %s162 = smul.u32 2, %s21
        %p163 = scmp.lt.s32.totalorder %s20, 1
        %s164 = scalar_select %p163, %s20, 1
        %p165 = scmp.lt.s32.totalorder %s162, 1
        %s166 = scalar_select %p165, %s162, 1
        %s167 = smul.addr %s164, 10
        %s168 = sadd.s32 %s166, %s167
        %s169 = smul.addr %s168, 8
        %s170 = scalar_lea.vmem %s1, %s169
        %s171 = smul.u32 2, %s21
        %s172 = smul.u32 2, %s21
        %v173 = vld [vmem:[%s0] sm:$0xff]
        %v174 = vld [vmem:[%s0 + $0x8] sm:$0xff]
        %v175 = vld [vmem:[%s170] sm:$0xff]
        %v176 = vld [vmem:[%s170 + $0x8] sm:$0xff]
        %v177 = vld [vmem:[%s170 + $0x10] sm:$0xff]
        %v178 = vld [vmem:[%s170 + $0x18] sm:$0xff]
        %v179 = vld [vmem:[%s170 + $0x20] sm:$0xff]
        %v180 = vld [vmem:[%s170 + $0x28] sm:$0xff]
        %v181 = vld [vmem:[%s170 + $0x30] sm:$0xff]
        %v182 = vld [vmem:[%s170 + $0x38] sm:$0xff]
        %v183 = vld [vmem:[%s170 + $0x40] sm:$0xf]
        %v184 = vld [vmem:[%s170 + $0x48] sm:$0xf]
        %vm185 = vcmask 293888
        %v187 = vsel %vm185, %v173, 0
        %v190 = vsel %vm185, %v174, 0
        %vm192 = vcmask 1043456
        %v194 = vsel %vm192, %v183, 0
        %v197 = vsel %vm192, %v184, 0
        %199 = vmatprep.subr.mxu0 %v176
        %200 = vmatpush1.msra.mxu0 %v175
        %201 = vmatprep.subr.mxu0 %v178
        %202 = vmatpush1.msra.mxu0 %v177
        %203 = vmatprep.subr.mxu0 %v180
        %204 = vmatpush1.msra.mxu0 %v179
        %205 = vmatprep.subr.mxu0 %v182
        %206 = vmatpush1.msra.mxu0 %v181
        %207 = vmatprep.subr.mxu0 %v197
        %208 = vmatpush1.msra.mxu0 %v194
        %209 = vmatprep.subr.mxu0 0.0
        %210 = vmatpush1.msra.mxu0 0.0
        %211 = vmatprep.subr.mxu0 0.0
        %212 = vmatpush1.msra.mxu0 0.0
        %213 = vmatprep.subr.mxu0 0.0
        %214 = vmatpush1.msra.mxu0 0.0
        %215 = vmatprep.subr.mxu0 0.0
        %216 = vmatpush1.msra.mxu0 0.0
        %217 = vmatprep.subr.mxu0 0.0
        %218 = vmatpush1.msra.mxu0 0.0
        %219 = vmatprep.subr.mxu0 0.0
        %220 = vmatpush1.msra.mxu0 0.0
        %221 = vmatprep.subr.mxu0 0.0
        %222 = vmatpush1.msra.mxu0 0.0
        %223 = vmatprep.subr.mxu0 0.0
        %224 = vmatpush1.msra.mxu0 0.0
        %225 = vmatprep.subr.mxu0 0.0
        %226 = vmatpush1.msra.mxu0 0.0
        %227 = vmatprep.subr.mxu0 0.0
        %228 = vmatpush1.msra.mxu0 0.0
        %229 = vmatprep.subr.mxu0 0.0
        %230 = vmatpush1.msra.mxu0 0.0
        %231 = vmatprep.subr.mxu0 0.0
        %232 = vmatpush1.msra.mxu0 0.0
        %233 = vmatprep.subr.mxu0 0.0
        %234 = vmatpush1.msra.mxu0 0.0
        %235 = vmatprep.subr.mxu0 0.0
        %236 = vmatpush1.msra.mxu0 0.0
        %237 = vmatprep.subr.mxu0 0.0
        %238 = vmatpush1.msra.mxu0 0.0
        %239 = vmatprep.subr.mxu0 0.0
        %240 = vmatpush1.msra.mxu0 0.0
        %241 = vmatprep.subr.mxu0 0.0
        %242 = vmatpush1.msra.mxu0 0.0
        %243 = vmatprep.subr.mxu0 0.0
        %244 = vmatpush1.msra.mxu0 0.0
        %245 = vmatprep.subr.mxu0 0.0
        %246 = vmatpush1.msra.mxu0 0.0
        %247 = vmatprep.subr.mxu0 0.0
        %248 = vmatpush1.msra.mxu0 0.0
        %249 = vmatprep.subr.mxu0 0.0
        %250 = vmatpush1.msra.mxu0 0.0
        %251 = vmatprep.subr.mxu0 0.0
        %252 = vmatpush1.msra.mxu0 0.0
        %253 = vmatprep.subr.mxu0 0.0
        %254 = vmatpush1.msra.mxu0 0.0
        %255 = vmatprep.subr.mxu0 0.0
        %256 = vmatpush1.msra.mxu0 0.0
        %257 = vmatprep.subr.mxu0 0.0
        %258 = vmatpush1.msra.mxu0 0.0
        %259 = vmatprep.subr.mxu0 0.0
        %260 = vmatpush1.msra.mxu0 0.0
        %261 = vmatprep.subr.mxu0 0.0
        %262 = vmatpush1.msra.mxu0 0.0
        %263 = vmatprep.mubr.f32.mxu0 0.0
        %264 = vmatmul.mubr.f32.gmra.mrb[0].mxu0 %v187
        %v265 = vpop.f32.mrb[0].mxu0
        %v266 = vadd.f32 0.0, %v265
        %v267 = vpop.f32.mrb[0].mxu0
        %v268 = vadd.f32 0.0, %v267
        %269 = vmatprep.mubr.f32.mxu0 0.0
        %270 = vmatmul.mubr.f32.gmra.mrb[0].mxu0 %v190
        %v271 = vpop.f32.mrb[0].mxu0
        %v272 = vadd.f32 0.0, %v271
        %v273 = vpop.f32.mrb[0].mxu0
        %v274 = vadd.f32 0.0, %v273
        %275 = vdwg.mxu0
        %v276 = vmax.f32 %v266, 0.0
        %v277 = vmax.f32 %v268, 0.0
        %v278 = vadd.f32 %v276, %v272
        %v279 = vadd.f32 %v277, %v274
        %280 = vst [vmem:[%s161] sm:$0xff] %v278
        %281 = vst [vmem:[%s161 + $0x8] sm:$0xff] %v279
        %s282 = sand.u32 %s87, 1
        %s283 = scalar_lea.sflag [#allocation3], %s282
        %s284 = sand.u32 %s87, 1
        %s285 = smul.addr %s284, 16
        %s286 = scalar_lea.vmem [#allocation2], %s285
        // Predicated region
        $region29: #{tpu_custom_call.1} parent=27 // pred_check
          %p287 = pneg %p97
        $region30: #{tpu_custom_call.1} parent=27 // pred_check_branch
          %289 = sbr.rel (%p287) target = $region32
        $region31: #{tpu_custom_call.1} parent=27 // pred_region
          %s290 = smul.u32 2, %s21
          %s292 = ssub.s32 256, 256
          %293 = vsyncadd %s283, %s292
          %s294 = smul.addr %s20, 2
          %s295 = sadd.s32 %s290, %s294
          %s296 = smul.addr %s295, 128
          %s297 = scalar_lea.hbm %s2, %s296
          %s299 = sshll.u32 %s286, 4
          %s300 = int_to_ptr.vmem [resolvable:$true] %s299
          %302 = dma.vmem_to_hbm [thread:$0]  %s300, 256, %s297, %s283
        $region32: #{tpu_custom_call.1} parent=27 // pred_fallthru
          _
      $region28: #{tpu_custom_call.1} parent=5 // pred_fallthru
        _
      %p303 = scmp.le.s32.totalorder 2, %s11
      // Predicated region
      $region33: #{tpu_custom_call.1} parent=5 // pred_check
        %p304 = pneg %p303
      $region34: #{tpu_custom_call.1} parent=5 // pred_check_branch
        %306 = sbr.rel (%p304) target = $region36
      $region35: #{tpu_custom_call.1} parent=5 // pred_region
        %s307 = ssub.s32 %s11, 2
        // Predicated region
        $region37: #{tpu_custom_call.1} parent=35 // pred_check
          %p308 = pneg %p103
        $region38: #{tpu_custom_call.1} parent=35 // pred_check_branch
          %310 = sbr.rel (%p308) target = $region40
        $region39: #{tpu_custom_call.1} parent=35 // pred_region
          %s311 = sand.u32 %s88, 1
          %s312 = scalar_lea.sflag [#allocation3], %s311
          %s313 = sand.u32 %s88, 1
          %s314 = smul.addr %s313, 16
          %s315 = scalar_lea.vmem [#allocation2], %s314
          %316 = dma.done %s312, 256
        $region40: #{tpu_custom_call.1} parent=35 // pred_fallthru
          _
      $region36: #{tpu_custom_call.1} parent=5 // pred_fallthru
        _
    $region6: #{tpu_custom_call.1} parent=1 // loop_footer
      %s15 = sadd.s32 1, %s11
    $region7: #{tpu_custom_call.1} parent=1 // loop_footer_branch
      %10 = sbr.rel target = $region3
    $region8: #{tpu_custom_call.1} parent=1 // loop_exit
      _
    %317 = vsyncpa [#allocation3], 1
    %s318 = scalar_lea.sflag [#allocation3], 1
    %319 = vsyncpa %s318, 1

</llo_original>
